<compile_context>
chip_gen: v7x
topology: tpu7x:2x2x1
jax: 0.10.0
libtpu: 0.0.40
codegen_flags: <defaults>
</compile_context>

<pallas_src>
import functools

import jax
import jax.numpy as jnp
from jax.experimental import pallas as pl
from jax.experimental.pallas import tpu as pltpu


def _round_up(v, m):
    return ((v + m - 1) // m) * m


def _default_vmem_limit_bytes():
    """~75% of physical VMEM (96 MiB on 128-MiB v5e/v6e, 48 MiB on 64-MiB v7x)."""
    try:
        cap = int(pltpu.get_tpu_info().vmem_capacity_bytes)
        return max(32 * 1024 * 1024, min(100 * 1024 * 1024, (cap * 3) // 4))
    except Exception:  # best-effort hardware query; any failure -> safe default
        return 64 * 1024 * 1024


_VMEM_LIMIT_BYTES = _default_vmem_limit_bytes()


def _pick_batch_tile(batch, batch_tile):
    """Auto batch tile: divides B, multiple of 8 when < B, targets <= 512 rows."""
    if batch_tile is not None:
        assert batch % batch_tile == 0, "batch_tile must divide the batch size"
        assert batch_tile == batch or batch_tile % 8 == 0, \
            "batch_tile < B must be a multiple of 8 (sublane packing)"
        return batch_tile
    if batch <= 512:
        # Prefer two tiles (v7x: work for both TensorCores) when cleanly possible.
        if batch % 2 == 0 and (batch // 2) % 8 == 0 and batch // 2 >= 64:
            return batch // 2
        return batch
    for tb in range(512, 7, -8):          # largest multiple-of-8 divisor <= 512
        if batch % tb == 0:
            return tb
    # TODO(synk): pad odd batch sizes up to a multiple of 8 instead of one huge tile.
    return batch


def _pick_k_tile(depth, n_cols):
    """K-tile the (D, N) weight slab when it would not sit comfortably in VMEM."""
    slab_bytes = depth * n_cols * 2                       # bf16 resident slab
    if slab_bytes <= 16 * 1024 * 1024 or depth % 128 != 0:
        return depth                                      # keep fully resident
    per_buffer_budget = 8 * 1024 * 1024                   # x2 for double buffering
    for cand in range(depth - (depth % 128), 0, -128):
        if depth % cand == 0 and cand * n_cols * 2 <= per_buffer_budget:
            return cand
    return depth


def pack_ensemble_params(weights, biases, *, no_softmax=False):
    """Pack (M, D, C) weights / (M, C) biases into the lane-dense slabs the kernel
    consumes.  Call ONCE per parameter set and reuse (do not repack every forward).

    Returns (w_packed (D, members*Cp) bf16, b_packed (1, members*Cp) f32,
             members, Cp)."""
    weights = jnp.asarray(weights, jnp.float32)
    biases = jnp.asarray(biases, jnp.float32)
    num_models, depth, num_classes = weights.shape
    padded_classes = _round_up(max(num_classes, 128), 128)
    pad_c = padded_classes - num_classes

    if no_softmax:
        # sum_m (x W_m + b_m) = x (sum_m W_m) + sum_m b_m  -> single member.
        w = jnp.pad(jnp.sum(weights, axis=0), ((0, 0), (0, pad_c)))       # (D, Cp)
        b = jnp.pad(jnp.sum(biases, axis=0), ((0, pad_c),))               # (Cp,)
        members = 1
    else:
        # (M, D, C) -> pad classes -> (D, M, Cp) -> (D, M*Cp).  Padded columns get
        # weight 0 / bias -1e9 so exp() of their logits is exactly 0 in the softmax.
        w = jnp.pad(weights, ((0, 0), (0, 0), (0, pad_c)))
        w = jnp.transpose(w, (1, 0, 2)).reshape(depth, num_models * padded_classes)
        b = jnp.pad(biases, ((0, 0), (0, pad_c)), constant_values=-1e9)
        b = b.reshape(num_models * padded_classes)
        members = num_models

    w_packed = w.astype(jnp.bfloat16)          # half the DMA bytes, 2x MXU rate
    b_packed = b.reshape(1, members * padded_classes).astype(jnp.float32)
    return w_packed, b_packed, members, padded_classes


def _ensemble_kernel(x_ref, w_ref, b_ref, o_ref, acc_ref, *, num_members,
                     padded_classes, no_softmax):
    """Grid step (i, k): batch tile i, reduction chunk k over the feature dim D.

    x_ref:   (TB, TK)  f32   input tile (cast to bf16 in-kernel)
    w_ref:   (TK, N)   bf16  packed weight slab chunk, N = num_members * Cp
    b_ref:   (1, N)    f32   packed biases
    o_ref:   (TB, Cp)  f32   ensemble output tile (lane-dense)
    acc_ref: (TB, N)   f32   logits accumulator across the K grid axis
    """
    k = pl.program_id(1)

    @pl.when(k == 0)
    def _():
        acc_ref[...] = jnp.zeros_like(acc_ref)

    # One wide MXU pass per K-chunk: (TB, TK) @ (TK, N) with f32 accumulation.
    x_bf = x_ref[...].astype(jnp.bfloat16)
    acc_ref[...] += jnp.dot(x_bf, w_ref[...], preferred_element_type=jnp.float32)

    @pl.when(k == pl.num_programs(1) - 1)
    def _():
        logits = acc_ref[...] + b_ref[...]                       # (TB, N)
        out = jnp.zeros((o_ref.shape[0], padded_classes), dtype=jnp.float32)
        # Static unrolled loop over lane-aligned Cp-wide member chunks.
        for m in range(num_members):
            l = logits[:, m * padded_classes:(m + 1) * padded_classes]
            if no_softmax:
                out = out + l
            else:
                mx = jnp.max(l, axis=-1, keepdims=True)          # XLU
                e = jnp.exp(l - mx)                              # EUP
                denom = jnp.sum(e, axis=-1, keepdims=True)       # XLU
                out = out + e * pl.reciprocal(denom, approx=True)  # EUP vrcp
        o_ref[...] = out


@functools.partial(
    jax.jit,
    static_argnames=("num_members", "num_classes", "no_softmax", "batch_tile"))
def simple_ensemble_forward(x, w_packed, b_packed, *, num_members, num_classes,
                            no_softmax=False, batch_tile=None):
    """x: (B, D) f32; w_packed/b_packed from pack_ensemble_params. Returns (B, C) f32."""
    batch, depth = x.shape
    n_cols = w_packed.shape[1]
    padded_classes = n_cols // num_members

    tb = _pick_batch_tile(batch, batch_tile)
    tk = _pick_k_tile(depth, n_cols)
    nb, nk = batch // tb, depth // tk

    kernel = functools.partial(
        _ensemble_kernel, num_members=num_members,
        padded_classes=padded_classes, no_softmax=no_softmax)

    # TODO(synk): when nk == 1 the constant-index W/bias blocks are still allocated
    # with 2 pipeline buffers; pipeline_mode=pl.Buffered(1) would halve that footprint.
    grid_spec = pltpu.PrefetchScalarGridSpec(
        num_scalar_prefetch=0,
        grid=(nb, nk),                                          # (batch, D-reduction)
        in_specs=[
            pl.BlockSpec((tb, tk), lambda i, k: (i, k)),        # x tile (f32)
            pl.BlockSpec((tk, n_cols), lambda i, k: (k, 0)),    # weight slab chunk
            pl.BlockSpec((1, n_cols), lambda i, k: (0, 0)),     # biases (resident)
        ],
        out_specs=pl.BlockSpec((tb, padded_classes), lambda i, k: (i, 0)),
        scratch_shapes=[pltpu.VMEM((tb, n_cols), jnp.float32)],  # logits accumulator
    )

    out_padded = pl.pallas_call(
        kernel,
        out_shape=jax.ShapeDtypeStruct((batch, padded_classes), jnp.float32),
        grid_spec=grid_spec,
        compiler_params=pltpu.CompilerParams(
            dimension_semantics=("parallel", "arbitrary"),
            vmem_limit_bytes=_VMEM_LIMIT_BYTES,
        ),
    )(x, w_packed, b_packed)

    return out_padded[:, :num_classes]


def reference_forward(x, weights, biases, no_softmax=False):
    """Pure-JAX f32 reference mirroring the PyTorch module semantics."""
    logits = jnp.einsum("bd,mdc->bmc", x, weights) + biases[None, :, :]
    out = logits if no_softmax else jax.nn.softmax(logits, axis=2)   # Softmax(dim=2)
    return jnp.sum(out, axis=1)                                      # sum over models


if __name__ == "__main__":
    key = jax.random.PRNGKey(0)
    B, D, C, M = 8, 128, 128, 3   # batch, features, classes, ensemble size

    kx, kw, kb = jax.random.split(key, 3)
    x = jax.random.normal(kx, (B, D), dtype=jnp.float32)
    weights = jax.random.normal(kw, (M, D, C), dtype=jnp.float32) * 0.05
    biases = jax.random.normal(kb, (M, C), dtype=jnp.float32) * 0.1

    # --- main path: softmax ensemble, lane-aligned C ---
    w_p, b_p, members, _ = pack_ensemble_params(weights, biases, no_softmax=False)
    out = simple_ensemble_forward(x, w_p, b_p, num_members=members,
                                  num_classes=C, no_softmax=False)
    out = jax.block_until_ready(out)
    ref = reference_forward(x, weights, biases, no_softmax=False)
    assert out.shape == (B, C), out.shape
    max_err = float(jnp.max(jnp.abs(out - ref)))
    assert jnp.allclose(out, ref, atol=3e-3, rtol=3e-2), max_err

    # --- extra checks: unaligned C (exercises 128-padding) and the algebraic
    #     no_softmax fast path (single collapsed matmul) ---
    C2 = 10
    w2, b2 = weights[:, :, :C2], biases[:, :C2]
    for nosm, atol in ((False, 5e-3), (True, 2e-2)):
        wp2, bp2, m2, _ = pack_ensemble_params(w2, b2, no_softmax=nosm)
        o2 = jax.block_until_ready(simple_ensemble_forward(
            x, wp2, bp2, num_members=m2, num_classes=C2, no_softmax=nosm))
        r2 = reference_forward(x, w2, b2, no_softmax=nosm)
        assert o2.shape == (B, C2), o2.shape
        err2 = float(jnp.max(jnp.abs(o2 - r2)))
        assert jnp.allclose(o2, r2, atol=atol, rtol=3e-2), (nosm, err2)

    print("KERNEL_OK")
</pallas_src>

<mosaic_0001>
module attributes {stable_mosaic.version = 11 : i64} {
  func.func @_ensemble_kernel(%arg0: i32, %arg1: i32, %arg2: memref<8x128xf32, #tpu.memory_space<vmem>>, %arg3: memref<128x384xbf16, #tpu.memory_space<vmem>>, %arg4: memref<1x384xf32, #tpu.memory_space<vmem>>, %arg5: memref<8x128xf32, #tpu.memory_space<vmem>>, %arg6: memref<8x384xf32, #tpu.memory_space<vmem>>) attributes {dimension_semantics = [#tpu.dimension_semantics<parallel>, #tpu.dimension_semantics<arbitrary>], iteration_bounds = array<i64: 1, 1>, scalar_prefetch = 0 : i64, scratch_operands = 1 : i64, tpu.core_type = #tpu.core_type<tc>, window_params = [{transform_indices = @transform_0, window_bounds = array<i64: 8, 128>}, {transform_indices = @transform_1, window_bounds = array<i64: 128, 384>}, {pipeline_mode = #tpu.pipeline_mode<synchronous>, transform_indices = @transform_2, window_bounds = array<i64: 1, 384>}, {transform_indices = @transform_3, window_bounds = array<i64: 8, 128>}]} {
    %c0_i32 = arith.constant 0 : i32
    %0 = arith.cmpi eq, %arg1, %c0_i32 : i32
    %1 = arith.extui %0 : i1 to i32
    %c0_i32_0 = arith.constant 0 : i32
    %2 = arith.cmpi ne, %1, %c0_i32_0 : i32
    scf.if %2 {
      %cst_10 = arith.constant 0.000000e+00 : f32
      %13 = vector.broadcast %cst_10 : f32 to vector<8x384xf32>
      %c0_11 = arith.constant 0 : index
      %c0_12 = arith.constant 0 : index
      %14 = vector.load %arg6[%c0_11, %c0_12] : memref<8x384xf32, #tpu.memory_space<vmem>>, vector<8x384xf32>
      tpu.vector_store %arg6[%c0_11, %c0_12], %13 {strides = array<i32>} : memref<8x384xf32, #tpu.memory_space<vmem>>, vector<8x384xf32>,
    } else {
    }
    %c0 = arith.constant 0 : index
    %c0_1 = arith.constant 0 : index
    %3 = vector.load %arg2[%c0, %c0_1] : memref<8x128xf32, #tpu.memory_space<vmem>>, vector<8x128xf32>
    %4 = arith.truncf %3 : vector<8x128xf32> to vector<8x128xbf16>
    %c0_2 = arith.constant 0 : index
    %c0_3 = arith.constant 0 : index
    %5 = vector.load %arg6[%c0_2, %c0_3] : memref<8x384xf32, #tpu.memory_space<vmem>>, vector<8x384xf32>
    %c0_4 = arith.constant 0 : index
    %c0_5 = arith.constant 0 : index
    %6 = vector.load %arg3[%c0_4, %c0_5] : memref<128x384xbf16, #tpu.memory_space<vmem>>, vector<128x384xbf16>
    %cst = arith.constant dense<0.000000e+00> : vector<8x384xf32>
    %7 = tpu.matmul %4, %6, %cst {dimension_numbers = #tpu.dot_dimension_numbers<[1], [0], [0], [1], [0, 0, 1, 1], [], []>} : vector<8x128xbf16>, vector<128x384xbf16>, vector<8x384xf32> -> vector<8x384xf32>
    %8 = arith.addf %5, %7 : vector<8x384xf32>
    %c0_6 = arith.constant 0 : index
    %c0_7 = arith.constant 0 : index
    %9 = vector.load %arg6[%c0_6, %c0_7] : memref<8x384xf32, #tpu.memory_space<vmem>>, vector<8x384xf32>
    tpu.vector_store %arg6[%c0_6, %c0_7], %8 {strides = array<i32>} : memref<8x384xf32, #tpu.memory_space<vmem>>, vector<8x384xf32>,
    %c0_i32_8 = arith.constant 0 : i32
    %10 = arith.cmpi eq, %arg1, %c0_i32_8 : i32
    %11 = arith.extui %10 : i1 to i32
    %c0_i32_9 = arith.constant 0 : i32
    %12 = arith.cmpi ne, %11, %c0_i32_9 : i32
    scf.if %12 {
      %c0_10 = arith.constant 0 : index
      %c0_11 = arith.constant 0 : index
      %13 = vector.load %arg6[%c0_10, %c0_11] : memref<8x384xf32, #tpu.memory_space<vmem>>, vector<8x384xf32>
      %c0_12 = arith.constant 0 : index
      %c0_13 = arith.constant 0 : index
      %14 = vector.load %arg4[%c0_12, %c0_13] : memref<1x384xf32, #tpu.memory_space<vmem>>, vector<1x384xf32>
      %15 = vector.broadcast %14 : vector<1x384xf32> to vector<8x384xf32>
      %16 = arith.addf %13, %15 : vector<8x384xf32>
      %cst_14 = arith.constant 0.000000e+00 : f32
      %17 = vector.broadcast %cst_14 : f32 to vector<8x128xf32>
      %18 = vector.extract_strided_slice %16 {offsets = [0, 0], sizes = [8, 128], strides = [1, 1]} : vector<8x384xf32> to vector<8x128xf32>
      %cst_15 = arith.constant dense<0xFF800000> : vector<8xf32>
      %19 = vector.multi_reduction <maximumf>, %18, %cst_15 [1] : vector<8x128xf32> to vector<8xf32>
      %20 = vector.shape_cast %19 : vector<8xf32> to vector<8x1xf32>
      %21 = vector.broadcast %20 : vector<8x1xf32> to vector<8x128xf32>
      %22 = arith.subf %18, %21 : vector<8x128xf32>
      %23 = math.exp %22 : vector<8x128xf32>
      %cst_16 = arith.constant dense<0.000000e+00> : vector<8xf32>
      %24 = vector.multi_reduction <add>, %23, %cst_16 [1] : vector<8x128xf32> to vector<8xf32>
      %25 = vector.shape_cast %24 : vector<8xf32> to vector<8x1xf32>
      %26 = tpu.reciprocal %25 {approx = true} : vector<8x1xf32> -> vector<8x1xf32>
      %27 = vector.broadcast %26 : vector<8x1xf32> to vector<8x128xf32>
      %28 = arith.mulf %23, %27 : vector<8x128xf32>
      %29 = arith.addf %17, %28 : vector<8x128xf32>
      %30 = vector.extract_strided_slice %16 {offsets = [0, 128], sizes = [8, 128], strides = [1, 1]} : vector<8x384xf32> to vector<8x128xf32>
      %cst_17 = arith.constant dense<0xFF800000> : vector<8xf32>
      %31 = vector.multi_reduction <maximumf>, %30, %cst_17 [1] : vector<8x128xf32> to vector<8xf32>
      %32 = vector.shape_cast %31 : vector<8xf32> to vector<8x1xf32>
      %33 = vector.broadcast %32 : vector<8x1xf32> to vector<8x128xf32>
      %34 = arith.subf %30, %33 : vector<8x128xf32>
      %35 = math.exp %34 : vector<8x128xf32>
      %cst_18 = arith.constant dense<0.000000e+00> : vector<8xf32>
      %36 = vector.multi_reduction <add>, %35, %cst_18 [1] : vector<8x128xf32> to vector<8xf32>
      %37 = vector.shape_cast %36 : vector<8xf32> to vector<8x1xf32>
      %38 = tpu.reciprocal %37 {approx = true} : vector<8x1xf32> -> vector<8x1xf32>
      %39 = vector.broadcast %38 : vector<8x1xf32> to vector<8x128xf32>
      %40 = arith.mulf %35, %39 : vector<8x128xf32>
      %41 = arith.addf %29, %40 : vector<8x128xf32>
      %42 = vector.extract_strided_slice %16 {offsets = [0, 256], sizes = [8, 128], strides = [1, 1]} : vector<8x384xf32> to vector<8x128xf32>
      %cst_19 = arith.constant dense<0xFF800000> : vector<8xf32>
      %43 = vector.multi_reduction <maximumf>, %42, %cst_19 [1] : vector<8x128xf32> to vector<8xf32>
      %44 = vector.shape_cast %43 : vector<8xf32> to vector<8x1xf32>
      %45 = vector.broadcast %44 : vector<8x1xf32> to vector<8x128xf32>
      %46 = arith.subf %42, %45 : vector<8x128xf32>
      %47 = math.exp %46 : vector<8x128xf32>
      %cst_20 = arith.constant dense<0.000000e+00> : vector<8xf32>
      %48 = vector.multi_reduction <add>, %47, %cst_20 [1] : vector<8x128xf32> to vector<8xf32>
      %49 = vector.shape_cast %48 : vector<8xf32> to vector<8x1xf32>
      %50 = tpu.reciprocal %49 {approx = true} : vector<8x1xf32> -> vector<8x1xf32>
      %51 = vector.broadcast %50 : vector<8x1xf32> to vector<8x128xf32>
      %52 = arith.mulf %47, %51 : vector<8x128xf32>
      %53 = arith.addf %41, %52 : vector<8x128xf32>
      %c0_21 = arith.constant 0 : index
      %c0_22 = arith.constant 0 : index
      %54 = vector.load %arg5[%c0_21, %c0_22] : memref<8x128xf32, #tpu.memory_space<vmem>>, vector<8x128xf32>
      tpu.vector_store %arg5[%c0_21, %c0_22], %53 {strides = array<i32>} : memref<8x128xf32, #tpu.memory_space<vmem>>, vector<8x128xf32>,
    } else {
    }
    return
  }
  func.func @transform_0(%arg0: i32, %arg1: i32) -> (i32, i32) {
    %c0_i32 = arith.constant 0 : i32
    return %arg0, %arg1 : i32, i32
  }
  func.func @transform_1(%arg0: i32, %arg1: i32) -> (i32, i32) {
    %c0_i32 = arith.constant 0 : i32
    %c0_i32_0 = arith.constant 0 : i32
    return %arg1, %c0_i32 : i32, i32
  }
  func.func @transform_2(%arg0: i32, %arg1: i32) -> (i32, i32) {
    %c0_i32 = arith.constant 0 : i32
    %c0_i32_0 = arith.constant 0 : i32
    %c0_i32_1 = arith.constant 0 : i32
    return %c0_i32, %c0_i32_0 : i32, i32
  }
  func.func @transform_3(%arg0: i32, %arg1: i32) -> (i32, i32) {
    %c0_i32 = arith.constant 0 : i32
    %c0_i32_0 = arith.constant 0 : i32
    return %arg0, %c0_i32 : i32, i32
  }
}

</mosaic_0001>

<llo_original>
// kernel: simple_ensemble_forward.1
$region0: #{simple_ensemble_forward.1}
  #allocation0 [shape = 'u32[]', space=smem, size = 0x4, offset = 0x4, fixed_abs, tag = 'smem constant byte address 0x4 - core index']
  #allocation1 [shape = 'u32[144,128]{1,0:T(1,128)}', space=vmem, size = 0x12000, scoped, tag = 'internal scratch']
  #allocation2 [shape = 'f32[8,384]{1,0:T(8,128)}', space=vmem, size = 0x3000, scoped, tag = 'scratch operand']
  %s0 = inlined_call_operand.hbm [shape: f32[8,128], index: 0, kind: input, shape index: {}]
  %s1 = inlined_call_operand.hbm [shape: bf16[128,384], index: 1, kind: input, shape index: {}]
  %s2 = inlined_call_operand.hbm [shape: f32[1,384], index: 2, kind: input, shape index: {}]
  %s3 = inlined_call_operand.hbm [shape: f32[8,128], index: 3, kind: output, shape index: {}]
  %s4 = sld [smem:[#allocation0]]
  $region42: #{simple_ensemble_forward.1} parent=0
    _
  %s6 = ssub.s32 1, %s4
  %s7 = scalar_select 0, %s6, %s4
  $region1: #{simple_ensemble_forward.1} parent=0
    #allocation3 [shape = 'u8[4096]{0}', space=vmem, size = 0x1000, scoped, tag = 'input window, operand 0, single buffered']
    #allocation4 [shape = 's32[1]{0}', space=sflag, size = 0x4, scoped, tag = 'scoped memory for simple_ensemble_forward.1']
    #allocation5 [shape = 's32[1]{0}', space=sflag, size = 0x4, scoped, tag = 'scoped memory for simple_ensemble_forward.1']
    #allocation6 [shape = 'u8[98304]{0}', space=vmem, size = 0x18000, scoped, tag = 'input window, operand 1, single buffered']
    #allocation7 [shape = 's32[1]{0}', space=sflag, size = 0x4, scoped, tag = 'scoped memory for simple_ensemble_forward.1']
    #allocation8 [shape = 'u8[1536]{0}', space=vmem, size = 0x800, scoped, tag = 'input window, operand 2, single buffered']
    #allocation9 [shape = 'u8[4096]{0}', space=vmem, size = 0x1000, scoped, tag = 'output window, operand 0, single buffered']
    %8 = vsyncpa [#allocation4], 0
    %9 = vsyncpa [#allocation7], 0
    %10 = vsyncpa [#allocation5], 0
    // Predicated region
    $region2: #{simple_ensemble_forward.1} parent=1 // pred_check
      _
    $region3: #{simple_ensemble_forward.1} parent=1 // pred_check_branch
      %12 = sbr.rel (0) target = $region5
    $region4: #{simple_ensemble_forward.1} parent=1 // pred_region
      %s14 = ssub.s32 128, 128
      %15 = vsyncadd [#allocation4], %s14
      %s17 = sshll.u32 [#allocation3], 4
      %s18 = int_to_ptr.vmem [resolvable:$true] %s17
      %20 = dma.hbm_to_vmem [thread:$0]  %s0, 128, %s18, [#allocation4]
    $region5: #{simple_ensemble_forward.1} parent=1 // pred_fallthru
      _
    // Predicated region
    $region6: #{simple_ensemble_forward.1} parent=1 // pred_check
      _
    $region7: #{simple_ensemble_forward.1} parent=1 // pred_check_branch
      %22 = sbr.rel (0) target = $region9
    $region8: #{simple_ensemble_forward.1} parent=1 // pred_region
      %s24 = ssub.s32 3072, 3072
      %25 = vsyncadd [#allocation7], %s24
      %s26 = sshll.u32 [#allocation6], 4
      %s27 = int_to_ptr.vmem [resolvable:$true] %s26
      %32 = dma.hbm_to_vmem [thread:$0]  %s1, 3072, %s27, [#allocation7], 192, 192, 12
    $region9: #{simple_ensemble_forward.1} parent=1 // pred_fallthru
      _
    // Predicated region
    $region10: #{simple_ensemble_forward.1} parent=1 // pred_check
      _
    $region11: #{simple_ensemble_forward.1} parent=1 // pred_check_branch
      %34 = sbr.rel (0) target = $region13
    $region12: #{simple_ensemble_forward.1} parent=1 // pred_region
      %s36 = ssub.s32 48, 48
      %37 = vsyncadd [#allocation7], %s36
      %s39 = sshll.u32 [#allocation8], 4
      %s40 = int_to_ptr.vmem [resolvable:$true] %s39
      %42 = dma.hbm_to_vmem [thread:$0]  %s2, 48, %s40, [#allocation7]
    $region13: #{simple_ensemble_forward.1} parent=1 // pred_fallthru
      _
    // Predicated region
    $region14: #{simple_ensemble_forward.1} parent=1 // pred_check
      _
    $region15: #{simple_ensemble_forward.1} parent=1 // pred_check_branch
      %44 = sbr.rel (0) target = $region17
    $region16: #{simple_ensemble_forward.1} parent=1 // pred_region
      %45 = dma.done [#allocation4], 128
    $region17: #{simple_ensemble_forward.1} parent=1 // pred_fallthru
      _
    // Predicated region
    $region18: #{simple_ensemble_forward.1} parent=1 // pred_check
      _
    $region19: #{simple_ensemble_forward.1} parent=1 // pred_check_branch
      %47 = sbr.rel (0) target = $region21
    $region20: #{simple_ensemble_forward.1} parent=1 // pred_region
      %48 = dma.done [#allocation7], 3072
    $region21: #{simple_ensemble_forward.1} parent=1 // pred_fallthru
      _
    // Predicated region
    $region22: #{simple_ensemble_forward.1} parent=1 // pred_check
      _
    $region23: #{simple_ensemble_forward.1} parent=1 // pred_check_branch
      %50 = sbr.rel (0) target = $region25
    $region24: #{simple_ensemble_forward.1} parent=1 // pred_region
      %51 = dma.done [#allocation7], 48
    $region25: #{simple_ensemble_forward.1} parent=1 // pred_fallthru
      _
    %p53 = scmp.eq.s32.totalorder 0, 0
    // Predicated region
    $region26: #{simple_ensemble_forward.1} parent=1 // pred_check
      %p54 = pneg %p53
    $region27: #{simple_ensemble_forward.1} parent=1 // pred_check_branch
      %56 = sbr.rel (%p54) target = $region29
    $region28: #{simple_ensemble_forward.1} parent=1 // pred_region
      %57 = vst [vmem:[#allocation2] sm:$0xff] 0.0
      %58 = vst [vmem:[#allocation2 + $0x8] sm:$0xff] 0.0
      %59 = vst [vmem:[#allocation2 + $0x10] sm:$0xff] 0.0
    $region29: #{simple_ensemble_forward.1} parent=1 // pred_fallthru
      _
    %v60 = vld [vmem:[#allocation3] sm:$0xff]
    %v61 = vpack.c.bf16 %v60, %v60
    %v62 = vld [vmem:[#allocation2] sm:$0xff]
    %v63 = vld [vmem:[#allocation2 + $0x8] sm:$0xff]
    %v64 = vld [vmem:[#allocation2 + $0x10] sm:$0xff]
    %v65 = vld [vmem:[#allocation6] sm:$0xff]
    %v66 = vld [vmem:[#allocation6 + $0x8] sm:$0xf]
    %v67 = vld [vmem:[#allocation6 + $0xc] sm:$0xff]
    %v68 = vld [vmem:[#allocation6 + $0x14] sm:$0xf]
    %v69 = vld [vmem:[#allocation6 + $0x18] sm:$0xff]
    %v70 = vld [vmem:[#allocation6 + $0x20] sm:$0xf]
    %v71 = vld [vmem:[#allocation6 + $0x24] sm:$0xff]
    %v72 = vld [vmem:[#allocation6 + $0x2c] sm:$0xf]
    %v73 = vld [vmem:[#allocation6 + $0x30] sm:$0xff]
    %v74 = vld [vmem:[#allocation6 + $0x38] sm:$0xf]
    %v75 = vld [vmem:[#allocation6 + $0x3c] sm:$0xff]
    %v76 = vld [vmem:[#allocation6 + $0x44] sm:$0xf]
    %v77 = vld [vmem:[#allocation6 + $0x48] sm:$0xff]
    %v78 = vld [vmem:[#allocation6 + $0x50] sm:$0xf]
    %v79 = vld [vmem:[#allocation6 + $0x54] sm:$0xff]
    %v80 = vld [vmem:[#allocation6 + $0x5c] sm:$0xf]
    %v81 = vld [vmem:[#allocation6 + $0x60] sm:$0xff]
    %v82 = vld [vmem:[#allocation6 + $0x68] sm:$0xf]
    %v83 = vld [vmem:[#allocation6 + $0x6c] sm:$0xff]
    %v84 = vld [vmem:[#allocation6 + $0x74] sm:$0xf]
    %v85 = vld [vmem:[#allocation6 + $0x78] sm:$0xff]
    %v86 = vld [vmem:[#allocation6 + $0x80] sm:$0xf]
    %v87 = vld [vmem:[#allocation6 + $0x84] sm:$0xff]
    %v88 = vld [vmem:[#allocation6 + $0x8c] sm:$0xf]
    %v89 = vld [vmem:[#allocation6 + $0x90] sm:$0xff]
    %v90 = vld [vmem:[#allocation6 + $0x98] sm:$0xf]
    %v91 = vld [vmem:[#allocation6 + $0x9c] sm:$0xff]
    %v92 = vld [vmem:[#allocation6 + $0xa4] sm:$0xf]
    %v93 = vld [vmem:[#allocation6 + $0xa8] sm:$0xff]
    %v94 = vld [vmem:[#allocation6 + $0xb0] sm:$0xf]
    %v95 = vld [vmem:[#allocation6 + $0xb4] sm:$0xff]
    %v96 = vld [vmem:[#allocation6 + $0xbc] sm:$0xf]
    %v129 = vunpack.c.l.b16 %v65
    %v130 = vunpack.c.h.b16 %v65
    %v131 = vunpack.c.l.b16 %v66
    %v132 = vunpack.c.l.b16 %v67
    %v133 = vunpack.c.h.b16 %v67
    %v134 = vunpack.c.l.b16 %v68
    %v135 = vunpack.c.l.b16 %v69
    %v136 = vunpack.c.h.b16 %v69
    %v137 = vunpack.c.l.b16 %v70
    %v138 = vunpack.c.l.b16 %v71
    %v139 = vunpack.c.h.b16 %v71
    %v140 = vunpack.c.l.b16 %v72
    %v141 = vunpack.c.l.b16 %v73
    %v142 = vunpack.c.h.b16 %v73
    %v143 = vunpack.c.l.b16 %v74
    %v144 = vunpack.c.l.b16 %v75
    %v145 = vunpack.c.h.b16 %v75
    %v146 = vunpack.c.l.b16 %v76
    %v147 = vunpack.c.l.b16 %v77
    %v148 = vunpack.c.h.b16 %v77
    %v149 = vunpack.c.l.b16 %v78
    %v150 = vunpack.c.l.b16 %v79
    %v151 = vunpack.c.h.b16 %v79
    %v152 = vunpack.c.l.b16 %v80
    %v153 = vunpack.c.l.b16 %v81
    %v154 = vunpack.c.h.b16 %v81
    %v155 = vunpack.c.l.b16 %v82
    %v156 = vunpack.c.l.b16 %v83
    %v157 = vunpack.c.h.b16 %v83
    %v158 = vunpack.c.l.b16 %v84
    %v159 = vunpack.c.l.b16 %v85
    %v160 = vunpack.c.h.b16 %v85
    %v161 = vunpack.c.l.b16 %v86
    %v162 = vunpack.c.l.b16 %v87
    %v163 = vunpack.c.h.b16 %v87
    %v164 = vunpack.c.l.b16 %v88
    %v165 = vunpack.c.l.b16 %v89
    %v166 = vunpack.c.h.b16 %v89
    %v167 = vunpack.c.l.b16 %v90
    %v168 = vunpack.c.l.b16 %v91
    %v169 = vunpack.c.h.b16 %v91
    %v170 = vunpack.c.l.b16 %v92
    %v171 = vunpack.c.l.b16 %v93
    %v172 = vunpack.c.h.b16 %v93
    %v173 = vunpack.c.l.b16 %v94
    %v174 = vunpack.c.l.b16 %v95
    %v175 = vunpack.c.h.b16 %v95
    %v176 = vunpack.c.l.b16 %v96
    %v177 = vpack.c.b16 %v132, %v129
    %v178 = vpack.c.b16 %v133, %v130
    %v179 = vpack.c.b16 %v134, %v131
    %v180 = vpack.c.b16 %v138, %v135
    %v181 = vpack.c.b16 %v139, %v136
    %v182 = vpack.c.b16 %v140, %v137
    %v183 = vpack.c.b16 %v144, %v141
    %v184 = vpack.c.b16 %v145, %v142
    %v185 = vpack.c.b16 %v146, %v143
    %v186 = vpack.c.b16 %v150, %v147
    %v187 = vpack.c.b16 %v151, %v148
    %v188 = vpack.c.b16 %v152, %v149
    %v189 = vpack.c.b16 %v156, %v153
    %v190 = vpack.c.b16 %v157, %v154
    %v191 = vpack.c.b16 %v158, %v155
    %v192 = vpack.c.b16 %v162, %v159
    %v193 = vpack.c.b16 %v163, %v160
    %v194 = vpack.c.b16 %v164, %v161
    %v195 = vpack.c.b16 %v168, %v165
    %v196 = vpack.c.b16 %v169, %v166
    %v197 = vpack.c.b16 %v170, %v167
    %v198 = vpack.c.b16 %v174, %v171
    %v199 = vpack.c.b16 %v175, %v172
    %v200 = vpack.c.b16 %v176, %v173
    %225 = vmatprep.subr.bf16.mxu0 %v178
    %226 = vmatpush1.bf16.msra.mxu0 %v177
    %227 = vmatprep.subr.bf16.mxu0 %v181
    %228 = vmatpush1.bf16.msra.mxu0 %v180
    %229 = vmatprep.subr.bf16.mxu0 %v184
    %230 = vmatpush1.bf16.msra.mxu0 %v183
    %231 = vmatprep.subr.bf16.mxu0 %v187
    %232 = vmatpush1.bf16.msra.mxu0 %v186
    %233 = vmatprep.subr.bf16.mxu0 %v190
    %234 = vmatpush1.bf16.msra.mxu0 %v189
    %235 = vmatprep.subr.bf16.mxu0 %v193
    %236 = vmatpush1.bf16.msra.mxu0 %v192
    %237 = vmatprep.subr.bf16.mxu0 %v196
    %238 = vmatpush1.bf16.msra.mxu0 %v195
    %239 = vmatprep.subr.bf16.mxu0 %v199
    %240 = vmatpush1.bf16.msra.mxu0 %v198
    %241 = vmatprep.subr.bf16.mxu0 0
    %242 = vmatpush1.bf16.msra.mxu0 0
    %243 = vmatprep.subr.bf16.mxu0 0
    %244 = vmatpush1.bf16.msra.mxu0 0
    %245 = vmatprep.subr.bf16.mxu0 0
    %246 = vmatpush1.bf16.msra.mxu0 0
    %247 = vmatprep.subr.bf16.mxu0 0
    %248 = vmatpush1.bf16.msra.mxu0 0
    %249 = vmatprep.subr.bf16.mxu0 0
    %250 = vmatpush1.bf16.msra.mxu0 0
    %251 = vmatprep.subr.bf16.mxu0 0
    %252 = vmatpush1.bf16.msra.mxu0 0
    %253 = vmatprep.subr.bf16.mxu0 0
    %254 = vmatpush1.bf16.msra.mxu0 0
    %255 = vmatprep.subr.bf16.mxu0 0
    %256 = vmatpush1.bf16.msra.mxu0 0
    %257 = vmatprep.mubr.bf16.mxu0 0
    %258 = vmatmul.mubr.bf16.gmra.mrb[0].mxu0 %v61
    %v259 = vpop.f32.mrb[0].mxu0
    %v260 = vadd.f32 0.0, %v259
    %v261 = vpop.f32.mrb[0].mxu0
    %v262 = vadd.f32 0.0, %v261
    %v263 = vpop.f32.mrb[0].mxu0
    %v264 = vpop.f32.mrb[0].mxu0
    %265 = vdwg.mxu0
    %266 = vmatprep.subr.bf16.mxu0 0
    %267 = vmatpush1.bf16.msra.mxu0 %v179
    %268 = vmatprep.subr.bf16.mxu0 0
    %269 = vmatpush1.bf16.msra.mxu0 %v182
    %270 = vmatprep.subr.bf16.mxu0 0
    %271 = vmatpush1.bf16.msra.mxu0 %v185
    %272 = vmatprep.subr.bf16.mxu0 0
    %273 = vmatpush1.bf16.msra.mxu0 %v188
    %274 = vmatprep.subr.bf16.mxu0 0
    %275 = vmatpush1.bf16.msra.mxu0 %v191
    %276 = vmatprep.subr.bf16.mxu0 0
    %277 = vmatpush1.bf16.msra.mxu0 %v194
    %278 = vmatprep.subr.bf16.mxu0 0
    %279 = vmatpush1.bf16.msra.mxu0 %v197
    %280 = vmatprep.subr.bf16.mxu0 0
    %281 = vmatpush1.bf16.msra.mxu0 %v200
    %282 = vmatprep.subr.bf16.mxu0 0
    %283 = vmatpush1.bf16.msra.mxu0 0
    %284 = vmatprep.subr.bf16.mxu0 0
    %285 = vmatpush1.bf16.msra.mxu0 0
    %286 = vmatprep.subr.bf16.mxu0 0
    %287 = vmatpush1.bf16.msra.mxu0 0
    %288 = vmatprep.subr.bf16.mxu0 0
    %289 = vmatpush1.bf16.msra.mxu0 0
    %290 = vmatprep.subr.bf16.mxu0 0
    %291 = vmatpush1.bf16.msra.mxu0 0
    %292 = vmatprep.subr.bf16.mxu0 0
    %293 = vmatpush1.bf16.msra.mxu0 0
    %294 = vmatprep.subr.bf16.mxu0 0
    %295 = vmatpush1.bf16.msra.mxu0 0
    %296 = vmatprep.subr.bf16.mxu0 0
    %297 = vmatpush1.bf16.msra.mxu0 0
    %298 = vmatprep.mubr.bf16.mxu0 0
    %299 = vmatmul.mubr.bf16.gmra.mrb[0].mxu0 %v61
    %v300 = vpop.f32.mrb[0].mxu0
    %v301 = vadd.f32 0.0, %v300
    %v302 = vpop.f32.mrb[0].mxu0
    %v303 = vpop.f32.mrb[0].mxu0
    %v304 = vpop.f32.mrb[0].mxu0
    %305 = vdwg.mxu0
    %v306 = vadd.f32 %v62, %v260
    %v307 = vadd.f32 %v63, %v262
    %v308 = vadd.f32 %v64, %v301
    %309 = vst [vmem:[#allocation2] sm:$0xff] %v306
    %310 = vst [vmem:[#allocation2 + $0x8] sm:$0xff] %v307
    %311 = vst [vmem:[#allocation2 + $0x10] sm:$0xff] %v308
    // Predicated region
    $region30: #{simple_ensemble_forward.1} parent=1 // pred_check
      %p312 = pneg %p53
    $region31: #{simple_ensemble_forward.1} parent=1 // pred_check_branch
      %314 = sbr.rel (%p312) target = $region33
    $region32: #{simple_ensemble_forward.1} parent=1 // pred_region
      %v315 = vld [vmem:[#allocation2] sm:$0xff]
      %v316 = vld [vmem:[#allocation2 + $0x8] sm:$0xff]
      %v317 = vld [vmem:[#allocation2 + $0x10] sm:$0xff]
      %v318 = vld [vmem:[#allocation8] sm:$0x7]
      %v320 = vlaneseq
      %v321 = vshrl.u32 %v320, 7
      %v322 = vsub.s32 0, %v321
      %v323 = vrot.slane %v318, %v322
      %v324 = vlaneseq
      %v325 = vshrl.u32 %v324, 7
      %v326 = vsub.s32 1, %v325
      %v327 = vrot.slane %v318, %v326
      %v328 = vlaneseq
      %v329 = vshrl.u32 %v328, 7
      %v330 = vsub.s32 2, %v329
      %v331 = vrot.slane %v318, %v330
      %v335 = vadd.f32 %v315, %v323
      %v336 = vadd.f32 %v316, %v327
      %v337 = vadd.f32 %v317, %v331
      %338 = vmax.xlane.f32.xlu0 %v335
      %v339 = vpop.xlane.xlu0 %338
      %v340 = vsub.f32 %v335, %v339
      %v341 = vmul.f32 %v340, 1.442695
      %v342 = vpow.pop %v341
      %343 = vadd.xlane.f32.xlu0 %v342
      %v344 = vpop.xlane.xlu0 %343
      %v345 = vrcp.pop %v344
      %v346 = vmul.f32 %v342, %v345
      %v347 = vadd.f32 %v346, 0.0
      %348 = vmax.xlane.f32.xlu0 %v336
      %v349 = vpop.xlane.xlu0 %348
      %v350 = vsub.f32 %v336, %v349
      %v351 = vmul.f32 %v350, 1.442695
      %v352 = vpow.pop %v351
      %353 = vadd.xlane.f32.xlu0 %v352
      %v354 = vpop.xlane.xlu0 %353
      %v355 = vrcp.pop %v354
      %v356 = vmul.f32 %v352, %v355
      %v357 = vadd.f32 %v347, %v356
      %358 = vmax.xlane.f32.xlu0 %v337
      %v359 = vpop.xlane.xlu0 %358
      %v360 = vsub.f32 %v337, %v359
      %v361 = vmul.f32 %v360, 1.442695
      %v362 = vpow.pop %v361
      %363 = vadd.xlane.f32.xlu0 %v362
      %v364 = vpop.xlane.xlu0 %363
      %v365 = vrcp.pop %v364
      %v366 = vmul.f32 %v362, %v365
      %v367 = vadd.f32 %v357, %v366
      %368 = vst [vmem:[#allocation9] sm:$0xff] %v367
    $region33: #{simple_ensemble_forward.1} parent=1 // pred_fallthru
      _
    // Predicated region
    $region34: #{simple_ensemble_forward.1} parent=1 // pred_check
      _
    $region35: #{simple_ensemble_forward.1} parent=1 // pred_check_branch
      %370 = sbr.rel (0) target = $region37
    $region36: #{simple_ensemble_forward.1} parent=1 // pred_region
      %s372 = ssub.s32 128, 128
      %373 = vsyncadd [#allocation5], %s372
      %s375 = sshll.u32 [#allocation9], 4
      %s376 = int_to_ptr.vmem [resolvable:$true] %s375
      %378 = dma.vmem_to_hbm [thread:$0]  %s376, 128, %s3, [#allocation5]
    $region37: #{simple_ensemble_forward.1} parent=1 // pred_fallthru
      _
    // Predicated region
    $region38: #{simple_ensemble_forward.1} parent=1 // pred_check
      _
    $region39: #{simple_ensemble_forward.1} parent=1 // pred_check_branch
      %380 = sbr.rel (0) target = $region41
    $region40: #{simple_ensemble_forward.1} parent=1 // pred_region
      %381 = dma.done [#allocation5], 128
    $region41: #{simple_ensemble_forward.1} parent=1 // pred_fallthru
      _
    %382 = vsyncpa [#allocation4], 1
    %383 = vsyncpa [#allocation7], 1
    %384 = vsyncpa [#allocation5], 1

</llo_original>
